<compile_context>
chip_gen: v7x
topology: tpu7x:2x2x1
jax: 0.10.0
libtpu: 0.0.40
codegen_flags: <defaults>
</compile_context>

<pallas_src>
import functools
from typing import NamedTuple

import jax
import jax.numpy as jnp
from jax import lax
from jax.experimental import pallas as pl
from jax.experimental.pallas import tpu as pltpu


HIDDEN = 128      # hidden width of the MLP (fixed by the module)
OUT_PAD = 128     # lane-dense padded output width
SUBTILE = 16      # bf16 sublane tile (row-alignment quantum for the slab)


def _round_up(x, m):
    return (x + m - 1) // m * m


class GenMeta(NamedTuple):
    """Static layout metadata for the packed weight slab."""
    num_classes: int
    emb_dim: int
    cls_pad: int      # class rows padded to a multiple of 16
    o_w1f: int        # row offset of fused layer-1 weights (emb_dim rows)
    o_wh: int         # row offset of w2; w3/w4/w5p follow at +128/+256/+384
    channels: int


def generator_kernel(labels_ref, z_ref, w_ref, b_ref, out_ref, *,
                     emb_dim, cls_pad, o_w1f, o_wh):
    """One batch tile, everything resident in VMEM.

    labels_ref : (TB, 1)     int32
    z_ref      : (TB, D)     f32
    w_ref      : (R, 128)    bf16   packed slab: [emb_tab | w1f | w2 w3 w4 | w5p]
    b_ref      : (5, 128)    f32    (b1_fused, b2, b3, b4, b5_padded)
    out_ref    : (TB, 128)   f32
    """
    lab = labels_ref[...]                                     # (TB, 1) int32
    tb = lab.shape[0]

    # In-kernel embedding lookup as a one-hot select on the MXU.
    # Labels >= num_classes hit zero-padded rows -> zero embedding
    # (torch.nn.Embedding would raise; inputs are assumed in range).
    cls = lax.broadcasted_iota(jnp.int32, (tb, cls_pad), 1)
    onehot = (cls == lab).astype(jnp.bfloat16)                # (TB, cls_pad)
    emb_tab = w_ref[0:cls_pad, 0:emb_dim]                     # (cls_pad, D) bf16
    emb = jnp.dot(onehot, emb_tab,
                  preferred_element_type=jnp.float32)         # (TB, D) f32

    # input_ = embedding(labels) * z   (kept in f32: v5e has no bf16 VPU)
    x = emb * z_ref[...]                                      # (TB, D) f32

    b = b_ref[...]                                            # (5, 128) f32

    def linear(h, w, bias):
        return jnp.dot(h.astype(jnp.bfloat16), w,
                       preferred_element_type=jnp.float32) + bias

    # fused (fc + first hidden layer) + ReLU
    h = jnp.maximum(
        linear(x, w_ref[o_w1f:o_w1f + emb_dim, :], b[0:1, :]), 0.0)
    # hidden layers 2..4 (+ ReLU); static 16-aligned row views into the slab
    h = jnp.maximum(linear(h, w_ref[o_wh:o_wh + HIDDEN, :], b[1:2, :]), 0.0)
    h = jnp.maximum(
        linear(h, w_ref[o_wh + HIDDEN:o_wh + 2 * HIDDEN, :], b[2:3, :]), 0.0)
    h = jnp.maximum(
        linear(h, w_ref[o_wh + 2 * HIDDEN:o_wh + 3 * HIDDEN, :], b[3:4, :]), 0.0)
    # final (lane-dense, padded) layer, no activation
    out_ref[...] = linear(
        h, w_ref[o_wh + 3 * HIDDEN:o_wh + 4 * HIDDEN, :], b[4:5, :])


def init_generator_params(key, channels=1, num_classes=10, embedding_dim=32):
    """Deterministic synthetic parameter init (shapes match the PyTorch module)."""
    ks = jax.random.split(key, 7)

    def dense(k, fan_in, fan_out):
        kw, kb = jax.random.split(k)
        scale = 1.0 / jnp.sqrt(jnp.float32(fan_in))
        w = jax.random.uniform(kw, (fan_in, fan_out), jnp.float32, -scale, scale)
        bias = jax.random.uniform(kb, (1, fan_out), jnp.float32, -scale, scale)
        return w, bias

    params = {
        "embedding": jax.random.normal(ks[0], (num_classes, embedding_dim),
                                       jnp.float32),
    }
    params["wfc"], params["bfc"] = dense(ks[1], embedding_dim, embedding_dim)
    params["w1"], params["b1"] = dense(ks[2], embedding_dim, HIDDEN)
    params["w2"], params["b2"] = dense(ks[3], HIDDEN, HIDDEN)
    params["w3"], params["b3"] = dense(ks[4], HIDDEN, HIDDEN)
    params["w4"], params["b4"] = dense(ks[5], HIDDEN, HIDDEN)
    params["w5"], params["b5"] = dense(ks[6], HIDDEN, channels)
    return params


def pack_generator_params(params):
    """One-time prep: fuse fc into layer 1, then pack every bf16 weight into a
    single (rows, 128) slab with 16-row-aligned sections.  Returns
    (arrays, meta) where `meta` carries the static slab layout."""
    num_classes, emb_dim = params["embedding"].shape
    channels = params["w5"].shape[1]
    assert emb_dim <= HIDDEN, "embedding_dim must fit in the 128-lane slab"
    assert channels <= OUT_PAD

    # Exact fusion: no nonlinearity between fc and the first Linear.
    # (Computed in f32 then cast once to bf16 -- rounds slightly differently
    #  than two separate bf16 matmuls; covered by the f32 reference test.)
    w1f = params["wfc"] @ params["w1"]                        # (D, 128)
    b1f = params["bfc"] @ params["w1"] + params["b1"]         # (1, 128)

    # Lane-dense final layer: zero-pad channels -> 128 output lanes.
    w5p = jnp.zeros((HIDDEN, OUT_PAD), jnp.float32).at[:, :channels].set(
        params["w5"])
    b5p = jnp.zeros((1, OUT_PAD), jnp.float32).at[:, :channels].set(
        params["b5"])

    cls_pad = _round_up(num_classes, SUBTILE)
    d_pad = _round_up(emb_dim, SUBTILE)
    o_w1f = cls_pad
    o_wh = cls_pad + d_pad
    rows = o_wh + 4 * HIDDEN                                  # 16+32+512 = 560

    slab = jnp.zeros((rows, HIDDEN), jnp.float32)
    slab = slab.at[0:num_classes, 0:emb_dim].set(params["embedding"])
    slab = slab.at[o_w1f:o_w1f + emb_dim, :].set(w1f)
    slab = slab.at[o_wh:o_wh + HIDDEN, :].set(params["w2"])
    slab = slab.at[o_wh + HIDDEN:o_wh + 2 * HIDDEN, :].set(params["w3"])
    slab = slab.at[o_wh + 2 * HIDDEN:o_wh + 3 * HIDDEN, :].set(params["w4"])
    slab = slab.at[o_wh + 3 * HIDDEN:o_wh + 4 * HIDDEN, :].set(w5p)

    arrays = {
        "weights": slab.astype(jnp.bfloat16),                 # (560, 128) bf16
        "biases": jnp.concatenate(
            [b1f, params["b2"], params["b3"], params["b4"], b5p],
            axis=0),                                          # (5, 128) f32
    }
    meta = GenMeta(num_classes=num_classes, emb_dim=emb_dim, cls_pad=cls_pad,
                   o_w1f=o_w1f, o_wh=o_wh, channels=channels)
    return arrays, meta


def make_generator_forward(meta: GenMeta, *, batch_tile=None,
                           slice_channels=True):
    """Builds a jitted forward(weights, biases, labels, z).

    batch_tile=None (or >= batch): one gridless, fully VMEM-resident call
    (right choice for small batches -- no TensorCore split overhead).
    batch_tile=TB (multiple of 8): ONE pallas_call with grid=(batch//TB,);
    labels/z/out are batch-tiled, weights/biases use a constant index_map so
    they stay VMEM-resident across grid steps.  Mark the axis "parallel"
    (v7x 2-TC split) only when tiles carry real work.
    slice_channels=False returns the lane-padded (B, 128) block so a consumer
    can fuse the channel slice instead of paying an extra XLA op.
    """
    kernel = functools.partial(
        generator_kernel,
        emb_dim=meta.emb_dim, cls_pad=meta.cls_pad,
        o_w1f=meta.o_w1f, o_wh=meta.o_wh)

    @jax.jit
    def fwd(weights, biases, labels, z):
        batch = labels.shape[0]
        labels2d = labels.reshape(batch, 1).astype(jnp.int32)

        cost = pl.CostEstimate(
            flops=2 * batch * (meta.cls_pad * meta.emb_dim
                               + meta.emb_dim * HIDDEN
                               + 3 * HIDDEN * HIDDEN
                               + HIDDEN * OUT_PAD),
            transcendentals=0,
            bytes_accessed=(weights.size * 2 + biases.size * 4
                            + batch * (4 + meta.emb_dim * 4 + OUT_PAD * 4)),
        )

        if batch_tile is None or batch_tile >= batch:
            # Single shot: whole working set (~150 KB) resident in VMEM.
            vmem = pl.BlockSpec(memory_space=pltpu.MemorySpace.VMEM)
            out_padded = pl.pallas_call(
                kernel,
                out_shape=jax.ShapeDtypeStruct((batch, OUT_PAD), jnp.float32),
                in_specs=[vmem] * 4,
                out_specs=vmem,
                cost_estimate=cost,
            )(labels2d, z, weights, biases)
        else:
            tb = batch_tile
            assert tb % 8 == 0, "batch tile must be a multiple of 8 (f32 tile)"
            assert batch % tb == 0, "batch must divide evenly into tiles"
            n_tiles = batch // tb
            semantics = ("parallel",) if tb >= 128 else ("arbitrary",)
            grid_spec = pltpu.PrefetchScalarGridSpec(
                num_scalar_prefetch=0,
                grid=(n_tiles,),
                in_specs=[
                    pl.BlockSpec((tb, 1), lambda i: (i, 0)),
                    pl.BlockSpec((tb, meta.emb_dim), lambda i: (i, 0)),
                    # Constant index_map: weights/biases DMA'd once, stay
                    # VMEM-resident across all batch-tile grid steps.
                    pl.BlockSpec(weights.shape, lambda i: (0, 0)),
                    pl.BlockSpec(biases.shape, lambda i: (0, 0)),
                ],
                out_specs=pl.BlockSpec((tb, OUT_PAD), lambda i: (i, 0)),
            )
            out_padded = pl.pallas_call(
                kernel,
                out_shape=jax.ShapeDtypeStruct((batch, OUT_PAD), jnp.float32),
                grid_spec=grid_spec,
                compiler_params=pltpu.CompilerParams(
                    dimension_semantics=semantics),
                cost_estimate=cost,
            )(labels2d, z, weights, biases)

        if slice_channels:
            return out_padded[:, :meta.channels]
        return out_padded

    return fwd


def reference_forward(params, labels, z):
    """Pure-JAX fp32 reference of the original module's forward pass."""
    x = jnp.take(params["embedding"], labels, axis=0) * z
    x = x @ params["wfc"] + params["bfc"]
    for i in (1, 2, 3, 4):
        x = jnp.maximum(x @ params[f"w{i}"] + params[f"b{i}"], 0.0)
    return x @ params["w5"] + params["b5"]


if __name__ == "__main__":
    key = jax.random.PRNGKey(0)
    k_params, k_lab, k_z, k_lab2, k_z2 = jax.random.split(key, 5)

    # Small shapes consistent with the module (channels=1, num_classes=10,
    # embedding_dim kept small for the example).
    batch = 8
    channels = 1
    num_classes = 10
    embedding_dim = 32

    params = init_generator_params(k_params, channels=channels,
                                   num_classes=num_classes,
                                   embedding_dim=embedding_dim)
    arrays, meta = pack_generator_params(params)

    labels = jax.random.randint(k_lab, (batch,), 0, num_classes,
                                dtype=jnp.int32)
    # forward() samples z ~ N(0,1) when not provided; sampled here (host glue).
    # TODO(synk): in-module z sampling (torch.normal default) is done in the
    # wrapper with jax.random, not inside the kernel.
    z = jax.random.normal(k_z, (batch, embedding_dim), dtype=jnp.float32)

    # --- Path 1: small batch, single gridless VMEM-resident call -------------
    fwd = make_generator_forward(meta)
    out = jax.block_until_ready(fwd(arrays["weights"], arrays["biases"],
                                    labels, z))
    ref = reference_forward(params, labels, z)
    assert out.shape == (batch, channels), out.shape
    max_err = float(jnp.max(jnp.abs(out - ref)))
    assert jnp.allclose(out, ref, atol=3e-2, rtol=3e-2), (
        f"mismatch vs reference (max abs err {max_err})")

    # --- Path 2: many forwards amortized under one batched grid --------------
    big_batch, tile = 64, 16
    labels_b = jax.random.randint(k_lab2, (big_batch,), 0, num_classes,
                                  dtype=jnp.int32)
    z_b = jax.random.normal(k_z2, (big_batch, embedding_dim),
                            dtype=jnp.float32)
    fwd_b = make_generator_forward(meta, batch_tile=tile)
    out_b = jax.block_until_ready(fwd_b(arrays["weights"], arrays["biases"],
                                        labels_b, z_b))
    ref_b = reference_forward(params, labels_b, z_b)
    assert out_b.shape == (big_batch, channels), out_b.shape
    max_err_b = float(jnp.max(jnp.abs(out_b - ref_b)))
    assert jnp.allclose(out_b, ref_b, atol=3e-2, rtol=3e-2), (
        f"batched mismatch vs reference (max abs err {max_err_b})")

    print("KERNEL_OK")
</pallas_src>

<mosaic_0001>
module attributes {stable_mosaic.version = 11 : i64} {
  func.func @generator_kernel(%arg0: memref<8x1xi32, #tpu.memory_space<vmem>>, %arg1: memref<8x32xf32, #tpu.memory_space<vmem>>, %arg2: memref<560x128xbf16, #tpu.memory_space<vmem>>, %arg3: memref<5x128xf32, #tpu.memory_space<vmem>>, %arg4: memref<8x128xf32, #tpu.memory_space<vmem>>) attributes {dimension_semantics = [], scalar_prefetch = 0 : i64, scratch_operands = 0 : i64, tpu.core_type = #tpu.core_type<tc>} {
    %c0 = arith.constant 0 : index
    %c0_0 = arith.constant 0 : index
    %0 = vector.load %arg0[%c0, %c0_0] : memref<8x1xi32, #tpu.memory_space<vmem>>, vector<8x1xi32>
    %1 = tpu.iota {dimensions = array<i32: 1>} : vector<8x16xi32>
    %2 = vector.broadcast %0 : vector<8x1xi32> to vector<8x16xi32>
    %3 = arith.cmpi eq, %1, %2 : vector<8x16xi32>
    %4 = arith.extui %3 : vector<8x16xi1> to vector<8x16xi32>
    %5 = arith.sitofp %4 : vector<8x16xi32> to vector<8x16xf32>
    %6 = arith.truncf %5 : vector<8x16xf32> to vector<8x16xbf16>
    %c0_1 = arith.constant 0 : index
    %c0_2 = arith.constant 0 : index
    %7 = vector.load %arg2[%c0_1, %c0_2] : memref<560x128xbf16, #tpu.memory_space<vmem>>, vector<16x32xbf16>
    %cst = arith.constant dense<0.000000e+00> : vector<8x32xf32>
    %8 = tpu.matmul %6, %7, %cst {dimension_numbers = #tpu.dot_dimension_numbers<[1], [0], [0], [1], [0, 0, 1, 1], [], []>} : vector<8x16xbf16>, vector<16x32xbf16>, vector<8x32xf32> -> vector<8x32xf32>
    %c0_3 = arith.constant 0 : index
    %c0_4 = arith.constant 0 : index
    %9 = vector.load %arg1[%c0_3, %c0_4] : memref<8x32xf32, #tpu.memory_space<vmem>>, vector<8x32xf32>
    %10 = arith.mulf %8, %9 : vector<8x32xf32>
    %c0_5 = arith.constant 0 : index
    %c0_6 = arith.constant 0 : index
    %11 = vector.load %arg3[%c0_5, %c0_6] : memref<5x128xf32, #tpu.memory_space<vmem>>, vector<5x128xf32>
    %c16 = arith.constant 16 : index
    %c0_7 = arith.constant 0 : index
    %12 = vector.load %arg2[%c16, %c0_7] : memref<560x128xbf16, #tpu.memory_space<vmem>>, vector<32x128xbf16>
    %13 = vector.extract_strided_slice %11 {offsets = [0, 0], sizes = [1, 128], strides = [1, 1]} : vector<5x128xf32> to vector<1x128xf32>
    %14 = arith.truncf %10 : vector<8x32xf32> to vector<8x32xbf16>
    %cst_8 = arith.constant dense<0.000000e+00> : vector<8x128xf32>
    %15 = tpu.matmul %14, %12, %cst_8 {dimension_numbers = #tpu.dot_dimension_numbers<[1], [0], [0], [1], [0, 0, 1, 1], [], []>} : vector<8x32xbf16>, vector<32x128xbf16>, vector<8x128xf32> -> vector<8x128xf32>
    %16 = vector.broadcast %13 : vector<1x128xf32> to vector<8x128xf32>
    %17 = arith.addf %15, %16 : vector<8x128xf32>
    %cst_9 = arith.constant 0.000000e+00 : f32
    %18 = vector.broadcast %cst_9 : f32 to vector<8x128xf32>
    %19 = arith.maximumf %17, %18 : vector<8x128xf32>
    %c48 = arith.constant 48 : index
    %c0_10 = arith.constant 0 : index
    %20 = vector.load %arg2[%c48, %c0_10] : memref<560x128xbf16, #tpu.memory_space<vmem>>, vector<128x128xbf16>
    %21 = vector.extract_strided_slice %11 {offsets = [1, 0], sizes = [1, 128], strides = [1, 1]} : vector<5x128xf32> to vector<1x128xf32>
    %22 = arith.truncf %19 : vector<8x128xf32> to vector<8x128xbf16>
    %cst_11 = arith.constant dense<0.000000e+00> : vector<8x128xf32>
    %23 = tpu.matmul %22, %20, %cst_11 {dimension_numbers = #tpu.dot_dimension_numbers<[1], [0], [0], [1], [0, 0, 1, 1], [], []>} : vector<8x128xbf16>, vector<128x128xbf16>, vector<8x128xf32> -> vector<8x128xf32>
    %24 = vector.broadcast %21 : vector<1x128xf32> to vector<8x128xf32>
    %25 = arith.addf %23, %24 : vector<8x128xf32>
    %cst_12 = arith.constant 0.000000e+00 : f32
    %26 = vector.broadcast %cst_12 : f32 to vector<8x128xf32>
    %27 = arith.maximumf %25, %26 : vector<8x128xf32>
    %c176 = arith.constant 176 : index
    %c0_13 = arith.constant 0 : index
    %28 = vector.load %arg2[%c176, %c0_13] : memref<560x128xbf16, #tpu.memory_space<vmem>>, vector<128x128xbf16>
    %29 = vector.extract_strided_slice %11 {offsets = [2, 0], sizes = [1, 128], strides = [1, 1]} : vector<5x128xf32> to vector<1x128xf32>
    %30 = arith.truncf %27 : vector<8x128xf32> to vector<8x128xbf16>
    %cst_14 = arith.constant dense<0.000000e+00> : vector<8x128xf32>
    %31 = tpu.matmul %30, %28, %cst_14 {dimension_numbers = #tpu.dot_dimension_numbers<[1], [0], [0], [1], [0, 0, 1, 1], [], []>} : vector<8x128xbf16>, vector<128x128xbf16>, vector<8x128xf32> -> vector<8x128xf32>
    %32 = vector.broadcast %29 : vector<1x128xf32> to vector<8x128xf32>
    %33 = arith.addf %31, %32 : vector<8x128xf32>
    %cst_15 = arith.constant 0.000000e+00 : f32
    %34 = vector.broadcast %cst_15 : f32 to vector<8x128xf32>
    %35 = arith.maximumf %33, %34 : vector<8x128xf32>
    %c304 = arith.constant 304 : index
    %c0_16 = arith.constant 0 : index
    %36 = vector.load %arg2[%c304, %c0_16] : memref<560x128xbf16, #tpu.memory_space<vmem>>, vector<128x128xbf16>
    %37 = vector.extract_strided_slice %11 {offsets = [3, 0], sizes = [1, 128], strides = [1, 1]} : vector<5x128xf32> to vector<1x128xf32>
    %38 = arith.truncf %35 : vector<8x128xf32> to vector<8x128xbf16>
    %cst_17 = arith.constant dense<0.000000e+00> : vector<8x128xf32>
    %39 = tpu.matmul %38, %36, %cst_17 {dimension_numbers = #tpu.dot_dimension_numbers<[1], [0], [0], [1], [0, 0, 1, 1], [], []>} : vector<8x128xbf16>, vector<128x128xbf16>, vector<8x128xf32> -> vector<8x128xf32>
    %40 = vector.broadcast %37 : vector<1x128xf32> to vector<8x128xf32>
    %41 = arith.addf %39, %40 : vector<8x128xf32>
    %cst_18 = arith.constant 0.000000e+00 : f32
    %42 = vector.broadcast %cst_18 : f32 to vector<8x128xf32>
    %43 = arith.maximumf %41, %42 : vector<8x128xf32>
    %c432 = arith.constant 432 : index
    %c0_19 = arith.constant 0 : index
    %44 = vector.load %arg2[%c432, %c0_19] : memref<560x128xbf16, #tpu.memory_space<vmem>>, vector<128x128xbf16>
    %45 = vector.extract_strided_slice %11 {offsets = [4, 0], sizes = [1, 128], strides = [1, 1]} : vector<5x128xf32> to vector<1x128xf32>
    %46 = arith.truncf %43 : vector<8x128xf32> to vector<8x128xbf16>
    %cst_20 = arith.constant dense<0.000000e+00> : vector<8x128xf32>
    %47 = tpu.matmul %46, %44, %cst_20 {dimension_numbers = #tpu.dot_dimension_numbers<[1], [0], [0], [1], [0, 0, 1, 1], [], []>} : vector<8x128xbf16>, vector<128x128xbf16>, vector<8x128xf32> -> vector<8x128xf32>
    %48 = vector.broadcast %45 : vector<1x128xf32> to vector<8x128xf32>
    %49 = arith.addf %47, %48 : vector<8x128xf32>
    %c0_21 = arith.constant 0 : index
    %c0_22 = arith.constant 0 : index
    %50 = vector.load %arg4[%c0_21, %c0_22] : memref<8x128xf32, #tpu.memory_space<vmem>>, vector<8x128xf32>
    tpu.vector_store %arg4[%c0_21, %c0_22], %49 {strides = array<i32>} : memref<8x128xf32, #tpu.memory_space<vmem>>, vector<8x128xf32>,
    return
  }
}

</mosaic_0001>

<llo_original>
// kernel: fwd.1
$region0: #{fwd.1}
  #allocation0 [shape = 'u32[]', space=smem, size = 0x4, offset = 0x4, fixed_abs, tag = 'smem constant byte address 0x4 - core index']
  #allocation1 [shape = 'u32[144,128]{1,0:T(1,128)}', space=vmem, size = 0x12000, scoped, tag = 'internal scratch']
  %s0 = inlined_call_operand.vmem [shape: s32[8,1], index: 0, kind: input, shape index: {}]
  %s1 = inlined_call_operand.vmem [shape: f32[8,32], index: 1, kind: input, shape index: {}]
  %s2 = inlined_call_operand.hbm [shape: bf16[560,128], index: 2, kind: input, shape index: {}]
  %s3 = inlined_call_operand.vmem [shape: f32[5,128], index: 3, kind: input, shape index: {}]
  %s4 = inlined_call_operand.vmem [shape: f32[8,128], index: 4, kind: output, shape index: {}]
  %s5 = sld [smem:[#allocation0]]
  $region30: #{fwd.1} parent=0
    _
  %s7 = ssub.s32 1, %s5
  %s8 = scalar_select 0, %s7, %s5
  $region1: #{fwd.1} parent=0
    #allocation2 [shape = 'u8[143360]{0}', space=vmem, size = 0x23000, scoped, tag = 'input window, operand 2, single buffered']
    #allocation3 [shape = 's32[1]{0}', space=sflag, size = 0x4, scoped, tag = 'scoped memory for fwd.1']
    %9 = vsyncpa [#allocation3], 0
    // Predicated region
    $region2: #{fwd.1} parent=1 // pred_check
      _
    $region3: #{fwd.1} parent=1 // pred_check_branch
      %11 = sbr.rel (0) target = $region5
    $region4: #{fwd.1} parent=1 // pred_region
      _
    $region5: #{fwd.1} parent=1 // pred_fallthru
      _
    // Predicated region
    $region6: #{fwd.1} parent=1 // pred_check
      _
    $region7: #{fwd.1} parent=1 // pred_check_branch
      %13 = sbr.rel (0) target = $region9
    $region8: #{fwd.1} parent=1 // pred_region
      _
    $region9: #{fwd.1} parent=1 // pred_fallthru
      _
    // Predicated region
    $region10: #{fwd.1} parent=1 // pred_check
      _
    $region11: #{fwd.1} parent=1 // pred_check_branch
      %15 = sbr.rel (0) target = $region13
    $region12: #{fwd.1} parent=1 // pred_region
      %s17 = ssub.s32 4480, 4480
      %18 = vsyncadd [#allocation3], %s17
      %s19 = sshll.u32 [#allocation2], 4
      %s20 = int_to_ptr.vmem [resolvable:$true] %s19
      %25 = dma.hbm_to_vmem [thread:$0]  %s2, 4480, %s20, [#allocation3], 64, 64, 4
    $region13: #{fwd.1} parent=1 // pred_fallthru
      _
    // Predicated region
    $region14: #{fwd.1} parent=1 // pred_check
      _
    $region15: #{fwd.1} parent=1 // pred_check_branch
      %27 = sbr.rel (0) target = $region17
    $region16: #{fwd.1} parent=1 // pred_region
      _
    $region17: #{fwd.1} parent=1 // pred_fallthru
      _
    // Predicated region
    $region18: #{fwd.1} parent=1 // pred_check
      _
    $region19: #{fwd.1} parent=1 // pred_check_branch
      %29 = sbr.rel (0) target = $region21
    $region20: #{fwd.1} parent=1 // pred_region
      %30 = dma.done [#allocation3], 4480
    $region21: #{fwd.1} parent=1 // pred_fallthru
      _
    %v32 = vld [vmem:[%s0] sm:$0xff]
    %v33 = vlaneseq
    %v34 = vand.u32 %v33, 127
    %35 = vset.pattern.permute.xlu0 0
    %36 = vperm.xlu0 %35, %v32
    %v37 = vpop.permute.xlu0 %36
    %vm38 = vcmp.eq.s32.totalorder %v34, %v37
    %v39 = vsel %vm38, 1, 0
    %v40 = vcvt.s32.f32 %v39
    %v41 = vpack.c.bf16 %v40, %v40
    %v42 = vld [vmem:[#allocation2] sm:$0xf]
    %v43 = vld [vmem:[#allocation2 + $0x4] sm:$0xf]
    %v46 = vunpack.c.l.b16 %v42
    %v47 = vunpack.c.l.b16 %v43
    %v48 = vpack.c.b16 %v47, %v46
    %vm50 = vcmask 130048
    %v52 = vsel %vm50, %v41, 0
    %54 = vmatprep.subr.bf16.mxu0 0
    %55 = vmatpush1.bf16.msra.mxu0 %v48
    %56 = vmatprep.subr.bf16.mxu0 0
    %57 = vmatpush1.bf16.msra.mxu0 0
    %58 = vmatprep.subr.bf16.mxu0 0
    %59 = vmatpush1.bf16.msra.mxu0 0
    %60 = vmatprep.subr.bf16.mxu0 0
    %61 = vmatpush1.bf16.msra.mxu0 0
    %62 = vmatprep.subr.bf16.mxu0 0
    %63 = vmatpush1.bf16.msra.mxu0 0
    %64 = vmatprep.subr.bf16.mxu0 0
    %65 = vmatpush1.bf16.msra.mxu0 0
    %66 = vmatprep.subr.bf16.mxu0 0
    %67 = vmatpush1.bf16.msra.mxu0 0
    %68 = vmatprep.subr.bf16.mxu0 0
    %69 = vmatpush1.bf16.msra.mxu0 0
    %70 = vmatprep.subr.bf16.mxu0 0
    %71 = vmatpush1.bf16.msra.mxu0 0
    %72 = vmatprep.subr.bf16.mxu0 0
    %73 = vmatpush1.bf16.msra.mxu0 0
    %74 = vmatprep.subr.bf16.mxu0 0
    %75 = vmatpush1.bf16.msra.mxu0 0
    %76 = vmatprep.subr.bf16.mxu0 0
    %77 = vmatpush1.bf16.msra.mxu0 0
    %78 = vmatprep.subr.bf16.mxu0 0
    %79 = vmatpush1.bf16.msra.mxu0 0
    %80 = vmatprep.subr.bf16.mxu0 0
    %81 = vmatpush1.bf16.msra.mxu0 0
    %82 = vmatprep.subr.bf16.mxu0 0
    %83 = vmatpush1.bf16.msra.mxu0 0
    %84 = vmatprep.subr.bf16.mxu0 0
    %85 = vmatpush1.bf16.msra.mxu0 0
    %86 = vmatprep.mubr.bf16.mxu0 0
    %87 = vmatmul.mubr.bf16.gmra.mrb[0].mxu0 %v52
    %v88 = vpop.f32.mrb[0].mxu0
    %v89 = vadd.f32 0.0, %v88
    %v90 = vpop.f32.mrb[0].mxu0
    %v91 = vpop.f32.mrb[0].mxu0
    %v92 = vpop.f32.mrb[0].mxu0
    %93 = vdwg.mxu0
    %v94 = vld [vmem:[%s1] sm:$0xff]
    %v95 = vmul.f32 %v89, %v94
    %v96 = vld [vmem:[%s3] sm:$0x1f]
    %v97 = vld [vmem:[#allocation2 + $0x8] sm:$0xf]
    %v98 = vld [vmem:[#allocation2 + $0xc] sm:$0xf]
    %v99 = vld [vmem:[#allocation2 + $0x10] sm:$0xf]
    %v100 = vld [vmem:[#allocation2 + $0x14] sm:$0xf]
    %v101 = vpack.c.bf16 %v95, %v95
    %v102 = vlaneseq
    %v103 = vshrl.u32 %v102, 7
    %v104 = vsub.s32 0, %v103
    %v105 = vrot.slane %v96, %v104
    %v110 = vunpack.c.l.b16 %v97
    %v111 = vunpack.c.l.b16 %v98
    %v112 = vunpack.c.l.b16 %v99
    %v113 = vunpack.c.l.b16 %v100
    %v114 = vpack.c.b16 %v111, %v110
    %v115 = vpack.c.b16 %v113, %v112
    %vm118 = vcmask 261120
    %v120 = vsel %vm118, %v101, 0
    %122 = vmatprep.subr.bf16.mxu0 0
    %123 = vmatpush1.bf16.msra.mxu0 %v114
    %124 = vmatprep.subr.bf16.mxu0 0
    %125 = vmatpush1.bf16.msra.mxu0 %v115
    %126 = vmatprep.subr.bf16.mxu0 0
    %127 = vmatpush1.bf16.msra.mxu0 0
    %128 = vmatprep.subr.bf16.mxu0 0
    %129 = vmatpush1.bf16.msra.mxu0 0
    %130 = vmatprep.subr.bf16.mxu0 0
    %131 = vmatpush1.bf16.msra.mxu0 0
    %132 = vmatprep.subr.bf16.mxu0 0
    %133 = vmatpush1.bf16.msra.mxu0 0
    %134 = vmatprep.subr.bf16.mxu0 0
    %135 = vmatpush1.bf16.msra.mxu0 0
    %136 = vmatprep.subr.bf16.mxu0 0
    %137 = vmatpush1.bf16.msra.mxu0 0
    %138 = vmatprep.subr.bf16.mxu0 0
    %139 = vmatpush1.bf16.msra.mxu0 0
    %140 = vmatprep.subr.bf16.mxu0 0
    %141 = vmatpush1.bf16.msra.mxu0 0
    %142 = vmatprep.subr.bf16.mxu0 0
    %143 = vmatpush1.bf16.msra.mxu0 0
    %144 = vmatprep.subr.bf16.mxu0 0
    %145 = vmatpush1.bf16.msra.mxu0 0
    %146 = vmatprep.subr.bf16.mxu0 0
    %147 = vmatpush1.bf16.msra.mxu0 0
    %148 = vmatprep.subr.bf16.mxu0 0
    %149 = vmatpush1.bf16.msra.mxu0 0
    %150 = vmatprep.subr.bf16.mxu0 0
    %151 = vmatpush1.bf16.msra.mxu0 0
    %152 = vmatprep.subr.bf16.mxu0 0
    %153 = vmatpush1.bf16.msra.mxu0 0
    %154 = vmatprep.mubr.bf16.mxu0 0
    %155 = vmatmul.mubr.bf16.gmra.mrb[0].mxu0 %v120
    %v156 = vpop.f32.mrb[0].mxu0
    %v157 = vadd.f32 %v105, %v156
    %v158 = vpop.f32.mrb[0].mxu0
    %v159 = vpop.f32.mrb[0].mxu0
    %v160 = vpop.f32.mrb[0].mxu0
    %161 = vdwg.mxu0
    %v162 = vmax.f32 %v157, 0.0
    %v163 = vld [vmem:[#allocation2 + $0x18] sm:$0xf]
    %v164 = vld [vmem:[#allocation2 + $0x1c] sm:$0xf]
    %v165 = vld [vmem:[#allocation2 + $0x20] sm:$0xf]
    %v166 = vld [vmem:[#allocation2 + $0x24] sm:$0xf]
    %v167 = vld [vmem:[#allocation2 + $0x28] sm:$0xf]
    %v168 = vld [vmem:[#allocation2 + $0x2c] sm:$0xf]
    %v169 = vld [vmem:[#allocation2 + $0x30] sm:$0xf]
    %v170 = vld [vmem:[#allocation2 + $0x34] sm:$0xf]
    %v171 = vld [vmem:[#allocation2 + $0x38] sm:$0xf]
    %v172 = vld [vmem:[#allocation2 + $0x3c] sm:$0xf]
    %v173 = vld [vmem:[#allocation2 + $0x40] sm:$0xf]
    %v174 = vld [vmem:[#allocation2 + $0x44] sm:$0xf]
    %v175 = vld [vmem:[#allocation2 + $0x48] sm:$0xf]
    %v176 = vld [vmem:[#allocation2 + $0x4c] sm:$0xf]
    %v177 = vld [vmem:[#allocation2 + $0x50] sm:$0xf]
    %v178 = vld [vmem:[#allocation2 + $0x54] sm:$0xf]
    %v179 = vpack.c.bf16 %v162, %v162
    %v180 = vlaneseq
    %v181 = vshrl.u32 %v180, 7
    %v182 = vsub.s32 1, %v181
    %v183 = vrot.slane %v96, %v182
    %v200 = vunpack.c.l.b16 %v163
    %v201 = vunpack.c.l.b16 %v164
    %v202 = vunpack.c.l.b16 %v165
    %v203 = vunpack.c.l.b16 %v166
    %v204 = vunpack.c.l.b16 %v167
    %v205 = vunpack.c.l.b16 %v168
    %v206 = vunpack.c.l.b16 %v169
    %v207 = vunpack.c.l.b16 %v170
    %v208 = vunpack.c.l.b16 %v171
    %v209 = vunpack.c.l.b16 %v172
    %v210 = vunpack.c.l.b16 %v173
    %v211 = vunpack.c.l.b16 %v174
    %v212 = vunpack.c.l.b16 %v175
    %v213 = vunpack.c.l.b16 %v176
    %v214 = vunpack.c.l.b16 %v177
    %v215 = vunpack.c.l.b16 %v178
    %v216 = vpack.c.b16 %v201, %v200
    %v217 = vpack.c.b16 %v203, %v202
    %v218 = vpack.c.b16 %v205, %v204
    %v219 = vpack.c.b16 %v207, %v206
    %v220 = vpack.c.b16 %v209, %v208
    %v221 = vpack.c.b16 %v211, %v210
    %v222 = vpack.c.b16 %v213, %v212
    %v223 = vpack.c.b16 %v215, %v214
    %232 = vmatprep.subr.bf16.mxu0 0
    %233 = vmatpush1.bf16.msra.mxu0 %v216
    %234 = vmatprep.subr.bf16.mxu0 0
    %235 = vmatpush1.bf16.msra.mxu0 %v217
    %236 = vmatprep.subr.bf16.mxu0 0
    %237 = vmatpush1.bf16.msra.mxu0 %v218
    %238 = vmatprep.subr.bf16.mxu0 0
    %239 = vmatpush1.bf16.msra.mxu0 %v219
    %240 = vmatprep.subr.bf16.mxu0 0
    %241 = vmatpush1.bf16.msra.mxu0 %v220
    %242 = vmatprep.subr.bf16.mxu0 0
    %243 = vmatpush1.bf16.msra.mxu0 %v221
    %244 = vmatprep.subr.bf16.mxu0 0
    %245 = vmatpush1.bf16.msra.mxu0 %v222
    %246 = vmatprep.subr.bf16.mxu0 0
    %247 = vmatpush1.bf16.msra.mxu0 %v223
    %248 = vmatprep.subr.bf16.mxu0 0
    %249 = vmatpush1.bf16.msra.mxu0 0
    %250 = vmatprep.subr.bf16.mxu0 0
    %251 = vmatpush1.bf16.msra.mxu0 0
    %252 = vmatprep.subr.bf16.mxu0 0
    %253 = vmatpush1.bf16.msra.mxu0 0
    %254 = vmatprep.subr.bf16.mxu0 0
    %255 = vmatpush1.bf16.msra.mxu0 0
    %256 = vmatprep.subr.bf16.mxu0 0
    %257 = vmatpush1.bf16.msra.mxu0 0
    %258 = vmatprep.subr.bf16.mxu0 0
    %259 = vmatpush1.bf16.msra.mxu0 0
    %260 = vmatprep.subr.bf16.mxu0 0
    %261 = vmatpush1.bf16.msra.mxu0 0
    %262 = vmatprep.subr.bf16.mxu0 0
    %263 = vmatpush1.bf16.msra.mxu0 0
    %264 = vmatprep.mubr.bf16.mxu0 0
    %265 = vmatmul.mubr.bf16.gmra.mrb[0].mxu0 %v179
    %v266 = vpop.f32.mrb[0].mxu0
    %v267 = vadd.f32 %v183, %v266
    %v268 = vpop.f32.mrb[0].mxu0
    %v269 = vpop.f32.mrb[0].mxu0
    %v270 = vpop.f32.mrb[0].mxu0
    %271 = vdwg.mxu0
    %v272 = vmax.f32 %v267, 0.0
    %v273 = vld [vmem:[#allocation2 + $0x58] sm:$0xf]
    %v274 = vld [vmem:[#allocation2 + $0x5c] sm:$0xf]
    %v275 = vld [vmem:[#allocation2 + $0x60] sm:$0xf]
    %v276 = vld [vmem:[#allocation2 + $0x64] sm:$0xf]
    %v277 = vld [vmem:[#allocation2 + $0x68] sm:$0xf]
    %v278 = vld [vmem:[#allocation2 + $0x6c] sm:$0xf]
    %v279 = vld [vmem:[#allocation2 + $0x70] sm:$0xf]
    %v280 = vld [vmem:[#allocation2 + $0x74] sm:$0xf]
    %v281 = vld [vmem:[#allocation2 + $0x78] sm:$0xf]
    %v282 = vld [vmem:[#allocation2 + $0x7c] sm:$0xf]
    %v283 = vld [vmem:[#allocation2 + $0x80] sm:$0xf]
    %v284 = vld [vmem:[#allocation2 + $0x84] sm:$0xf]
    %v285 = vld [vmem:[#allocation2 + $0x88] sm:$0xf]
    %v286 = vld [vmem:[#allocation2 + $0x8c] sm:$0xf]
    %v287 = vld [vmem:[#allocation2 + $0x90] sm:$0xf]
    %v288 = vld [vmem:[#allocation2 + $0x94] sm:$0xf]
    %v289 = vpack.c.bf16 %v272, %v272
    %v290 = vlaneseq
    %v291 = vshrl.u32 %v290, 7
    %v292 = vsub.s32 2, %v291
    %v293 = vrot.slane %v96, %v292
    %v310 = vunpack.c.l.b16 %v273
    %v311 = vunpack.c.l.b16 %v274
    %v312 = vunpack.c.l.b16 %v275
    %v313 = vunpack.c.l.b16 %v276
    %v314 = vunpack.c.l.b16 %v277
    %v315 = vunpack.c.l.b16 %v278
    %v316 = vunpack.c.l.b16 %v279
    %v317 = vunpack.c.l.b16 %v280
    %v318 = vunpack.c.l.b16 %v281
    %v319 = vunpack.c.l.b16 %v282
    %v320 = vunpack.c.l.b16 %v283
    %v321 = vunpack.c.l.b16 %v284
    %v322 = vunpack.c.l.b16 %v285
    %v323 = vunpack.c.l.b16 %v286
    %v324 = vunpack.c.l.b16 %v287
    %v325 = vunpack.c.l.b16 %v288
    %v326 = vpack.c.b16 %v311, %v310
    %v327 = vpack.c.b16 %v313, %v312
    %v328 = vpack.c.b16 %v315, %v314
    %v329 = vpack.c.b16 %v317, %v316
    %v330 = vpack.c.b16 %v319, %v318
    %v331 = vpack.c.b16 %v321, %v320
    %v332 = vpack.c.b16 %v323, %v322
    %v333 = vpack.c.b16 %v325, %v324
    %342 = vmatprep.subr.bf16.mxu0 0
    %343 = vmatpush1.bf16.msra.mxu0 %v326
    %344 = vmatprep.subr.bf16.mxu0 0
    %345 = vmatpush1.bf16.msra.mxu0 %v327
    %346 = vmatprep.subr.bf16.mxu0 0
    %347 = vmatpush1.bf16.msra.mxu0 %v328
    %348 = vmatprep.subr.bf16.mxu0 0
    %349 = vmatpush1.bf16.msra.mxu0 %v329
    %350 = vmatprep.subr.bf16.mxu0 0
    %351 = vmatpush1.bf16.msra.mxu0 %v330
    %352 = vmatprep.subr.bf16.mxu0 0
    %353 = vmatpush1.bf16.msra.mxu0 %v331
    %354 = vmatprep.subr.bf16.mxu0 0
    %355 = vmatpush1.bf16.msra.mxu0 %v332
    %356 = vmatprep.subr.bf16.mxu0 0
    %357 = vmatpush1.bf16.msra.mxu0 %v333
    %358 = vmatprep.subr.bf16.mxu0 0
    %359 = vmatpush1.bf16.msra.mxu0 0
    %360 = vmatprep.subr.bf16.mxu0 0
    %361 = vmatpush1.bf16.msra.mxu0 0
    %362 = vmatprep.subr.bf16.mxu0 0
    %363 = vmatpush1.bf16.msra.mxu0 0
    %364 = vmatprep.subr.bf16.mxu0 0
    %365 = vmatpush1.bf16.msra.mxu0 0
    %366 = vmatprep.subr.bf16.mxu0 0
    %367 = vmatpush1.bf16.msra.mxu0 0
    %368 = vmatprep.subr.bf16.mxu0 0
    %369 = vmatpush1.bf16.msra.mxu0 0
    %370 = vmatprep.subr.bf16.mxu0 0
    %371 = vmatpush1.bf16.msra.mxu0 0
    %372 = vmatprep.subr.bf16.mxu0 0
    %373 = vmatpush1.bf16.msra.mxu0 0
    %374 = vmatprep.mubr.bf16.mxu0 0
    %375 = vmatmul.mubr.bf16.gmra.mrb[0].mxu0 %v289
    %v376 = vpop.f32.mrb[0].mxu0
    %v377 = vadd.f32 %v293, %v376
    %v378 = vpop.f32.mrb[0].mxu0
    %v379 = vpop.f32.mrb[0].mxu0
    %v380 = vpop.f32.mrb[0].mxu0
    %381 = vdwg.mxu0
    %v382 = vmax.f32 %v377, 0.0
    %v383 = vld [vmem:[#allocation2 + $0x98] sm:$0xf]
    %v384 = vld [vmem:[#allocation2 + $0x9c] sm:$0xf]
    %v385 = vld [vmem:[#allocation2 + $0xa0] sm:$0xf]
    %v386 = vld [vmem:[#allocation2 + $0xa4] sm:$0xf]
    %v387 = vld [vmem:[#allocation2 + $0xa8] sm:$0xf]
    %v388 = vld [vmem:[#allocation2 + $0xac] sm:$0xf]
    %v389 = vld [vmem:[#allocation2 + $0xb0] sm:$0xf]
    %v390 = vld [vmem:[#allocation2 + $0xb4] sm:$0xf]
    %v391 = vld [vmem:[#allocation2 + $0xb8] sm:$0xf]
    %v392 = vld [vmem:[#allocation2 + $0xbc] sm:$0xf]
    %v393 = vld [vmem:[#allocation2 + $0xc0] sm:$0xf]
    %v394 = vld [vmem:[#allocation2 + $0xc4] sm:$0xf]
    %v395 = vld [vmem:[#allocation2 + $0xc8] sm:$0xf]
    %v396 = vld [vmem:[#allocation2 + $0xcc] sm:$0xf]
    %v397 = vld [vmem:[#allocation2 + $0xd0] sm:$0xf]
    %v398 = vld [vmem:[#allocation2 + $0xd4] sm:$0xf]
    %v399 = vpack.c.bf16 %v382, %v382
    %v400 = vlaneseq
    %v401 = vshrl.u32 %v400, 7
    %v402 = vsub.s32 3, %v401
    %v403 = vrot.slane %v96, %v402
    %v420 = vunpack.c.l.b16 %v383
    %v421 = vunpack.c.l.b16 %v384
    %v422 = vunpack.c.l.b16 %v385
    %v423 = vunpack.c.l.b16 %v386
    %v424 = vunpack.c.l.b16 %v387
    %v425 = vunpack.c.l.b16 %v388
    %v426 = vunpack.c.l.b16 %v389
    %v427 = vunpack.c.l.b16 %v390
    %v428 = vunpack.c.l.b16 %v391
    %v429 = vunpack.c.l.b16 %v392
    %v430 = vunpack.c.l.b16 %v393
    %v431 = vunpack.c.l.b16 %v394
    %v432 = vunpack.c.l.b16 %v395
    %v433 = vunpack.c.l.b16 %v396
    %v434 = vunpack.c.l.b16 %v397
    %v435 = vunpack.c.l.b16 %v398
    %v436 = vpack.c.b16 %v421, %v420
    %v437 = vpack.c.b16 %v423, %v422
    %v438 = vpack.c.b16 %v425, %v424
    %v439 = vpack.c.b16 %v427, %v426
    %v440 = vpack.c.b16 %v429, %v428
    %v441 = vpack.c.b16 %v431, %v430
    %v442 = vpack.c.b16 %v433, %v432
    %v443 = vpack.c.b16 %v435, %v434
    %452 = vmatprep.subr.bf16.mxu0 0
    %453 = vmatpush1.bf16.msra.mxu0 %v436
    %454 = vmatprep.subr.bf16.mxu0 0
    %455 = vmatpush1.bf16.msra.mxu0 %v437
    %456 = vmatprep.subr.bf16.mxu0 0
    %457 = vmatpush1.bf16.msra.mxu0 %v438
    %458 = vmatprep.subr.bf16.mxu0 0
    %459 = vmatpush1.bf16.msra.mxu0 %v439
    %460 = vmatprep.subr.bf16.mxu0 0
    %461 = vmatpush1.bf16.msra.mxu0 %v440
    %462 = vmatprep.subr.bf16.mxu0 0
    %463 = vmatpush1.bf16.msra.mxu0 %v441
    %464 = vmatprep.subr.bf16.mxu0 0
    %465 = vmatpush1.bf16.msra.mxu0 %v442
    %466 = vmatprep.subr.bf16.mxu0 0
    %467 = vmatpush1.bf16.msra.mxu0 %v443
    %468 = vmatprep.subr.bf16.mxu0 0
    %469 = vmatpush1.bf16.msra.mxu0 0
    %470 = vmatprep.subr.bf16.mxu0 0
    %471 = vmatpush1.bf16.msra.mxu0 0
    %472 = vmatprep.subr.bf16.mxu0 0
    %473 = vmatpush1.bf16.msra.mxu0 0
    %474 = vmatprep.subr.bf16.mxu0 0
    %475 = vmatpush1.bf16.msra.mxu0 0
    %476 = vmatprep.subr.bf16.mxu0 0
    %477 = vmatpush1.bf16.msra.mxu0 0
    %478 = vmatprep.subr.bf16.mxu0 0
    %479 = vmatpush1.bf16.msra.mxu0 0
    %480 = vmatprep.subr.bf16.mxu0 0
    %481 = vmatpush1.bf16.msra.mxu0 0
    %482 = vmatprep.subr.bf16.mxu0 0
    %483 = vmatpush1.bf16.msra.mxu0 0
    %484 = vmatprep.mubr.bf16.mxu0 0
    %485 = vmatmul.mubr.bf16.gmra.mrb[0].mxu0 %v399
    %v486 = vpop.f32.mrb[0].mxu0
    %v487 = vadd.f32 %v403, %v486
    %v488 = vpop.f32.mrb[0].mxu0
    %v489 = vpop.f32.mrb[0].mxu0
    %v490 = vpop.f32.mrb[0].mxu0
    %491 = vdwg.mxu0
    %v492 = vmax.f32 %v487, 0.0
    %v493 = vld [vmem:[#allocation2 + $0xd8] sm:$0xf]
    %v494 = vld [vmem:[#allocation2 + $0xdc] sm:$0xf]
    %v495 = vld [vmem:[#allocation2 + $0xe0] sm:$0xf]
    %v496 = vld [vmem:[#allocation2 + $0xe4] sm:$0xf]
    %v497 = vld [vmem:[#allocation2 + $0xe8] sm:$0xf]
    %v498 = vld [vmem:[#allocation2 + $0xec] sm:$0xf]
    %v499 = vld [vmem:[#allocation2 + $0xf0] sm:$0xf]
    %v500 = vld [vmem:[#allocation2 + $0xf4] sm:$0xf]
    %v501 = vld [vmem:[#allocation2 + $0xf8] sm:$0xf]
    %v502 = vld [vmem:[#allocation2 + $0xfc] sm:$0xf]
    %v503 = vld [vmem:[#allocation2 + $0x100] sm:$0xf]
    %v504 = vld [vmem:[#allocation2 + $0x104] sm:$0xf]
    %v505 = vld [vmem:[#allocation2 + $0x108] sm:$0xf]
    %v506 = vld [vmem:[#allocation2 + $0x10c] sm:$0xf]
    %v507 = vld [vmem:[#allocation2 + $0x110] sm:$0xf]
    %v508 = vld [vmem:[#allocation2 + $0x114] sm:$0xf]
    %v509 = vpack.c.bf16 %v492, %v492
    %v510 = vlaneseq
    %v511 = vshrl.u32 %v510, 7
    %v512 = vsub.s32 4, %v511
    %v513 = vrot.slane %v96, %v512
    %v530 = vunpack.c.l.b16 %v493
    %v531 = vunpack.c.l.b16 %v494
    %v532 = vunpack.c.l.b16 %v495
    %v533 = vunpack.c.l.b16 %v496
    %v534 = vunpack.c.l.b16 %v497
    %v535 = vunpack.c.l.b16 %v498
    %v536 = vunpack.c.l.b16 %v499
    %v537 = vunpack.c.l.b16 %v500
    %v538 = vunpack.c.l.b16 %v501
    %v539 = vunpack.c.l.b16 %v502
    %v540 = vunpack.c.l.b16 %v503
    %v541 = vunpack.c.l.b16 %v504
    %v542 = vunpack.c.l.b16 %v505
    %v543 = vunpack.c.l.b16 %v506
    %v544 = vunpack.c.l.b16 %v507
    %v545 = vunpack.c.l.b16 %v508
    %v546 = vpack.c.b16 %v531, %v530
    %v547 = vpack.c.b16 %v533, %v532
    %v548 = vpack.c.b16 %v535, %v534
    %v549 = vpack.c.b16 %v537, %v536
    %v550 = vpack.c.b16 %v539, %v538
    %v551 = vpack.c.b16 %v541, %v540
    %v552 = vpack.c.b16 %v543, %v542
    %v553 = vpack.c.b16 %v545, %v544
    %562 = vmatprep.subr.bf16.mxu0 0
    %563 = vmatpush1.bf16.msra.mxu0 %v546
    %564 = vmatprep.subr.bf16.mxu0 0
    %565 = vmatpush1.bf16.msra.mxu0 %v547
    %566 = vmatprep.subr.bf16.mxu0 0
    %567 = vmatpush1.bf16.msra.mxu0 %v548
    %568 = vmatprep.subr.bf16.mxu0 0
    %569 = vmatpush1.bf16.msra.mxu0 %v549
    %570 = vmatprep.subr.bf16.mxu0 0
    %571 = vmatpush1.bf16.msra.mxu0 %v550
    %572 = vmatprep.subr.bf16.mxu0 0
    %573 = vmatpush1.bf16.msra.mxu0 %v551
    %574 = vmatprep.subr.bf16.mxu0 0
    %575 = vmatpush1.bf16.msra.mxu0 %v552
    %576 = vmatprep.subr.bf16.mxu0 0
    %577 = vmatpush1.bf16.msra.mxu0 %v553
    %578 = vmatprep.subr.bf16.mxu0 0
    %579 = vmatpush1.bf16.msra.mxu0 0
    %580 = vmatprep.subr.bf16.mxu0 0
    %581 = vmatpush1.bf16.msra.mxu0 0
    %582 = vmatprep.subr.bf16.mxu0 0
    %583 = vmatpush1.bf16.msra.mxu0 0
    %584 = vmatprep.subr.bf16.mxu0 0
    %585 = vmatpush1.bf16.msra.mxu0 0
    %586 = vmatprep.subr.bf16.mxu0 0
    %587 = vmatpush1.bf16.msra.mxu0 0
    %588 = vmatprep.subr.bf16.mxu0 0
    %589 = vmatpush1.bf16.msra.mxu0 0
    %590 = vmatprep.subr.bf16.mxu0 0
    %591 = vmatpush1.bf16.msra.mxu0 0
    %592 = vmatprep.subr.bf16.mxu0 0
    %593 = vmatpush1.bf16.msra.mxu0 0
    %594 = vmatprep.mubr.bf16.mxu0 0
    %595 = vmatmul.mubr.bf16.gmra.mrb[0].mxu0 %v509
    %v596 = vpop.f32.mrb[0].mxu0
    %v597 = vadd.f32 %v513, %v596
    %v598 = vpop.f32.mrb[0].mxu0
    %v599 = vpop.f32.mrb[0].mxu0
    %v600 = vpop.f32.mrb[0].mxu0
    %601 = vdwg.mxu0
    %602 = vst [vmem:[%s4] sm:$0xff] %v597
    // Predicated region
    $region22: #{fwd.1} parent=1 // pred_check
      _
    $region23: #{fwd.1} parent=1 // pred_check_branch
      %604 = sbr.rel (0) target = $region25
    $region24: #{fwd.1} parent=1 // pred_region
      _
    $region25: #{fwd.1} parent=1 // pred_fallthru
      _
    // Predicated region
    $region26: #{fwd.1} parent=1 // pred_check
      _
    $region27: #{fwd.1} parent=1 // pred_check_branch
      %606 = sbr.rel (0) target = $region29
    $region28: #{fwd.1} parent=1 // pred_region
      _
    $region29: #{fwd.1} parent=1 // pred_fallthru
      _
    %607 = vsyncpa [#allocation3], 1

</llo_original>
